<compile_context>
chip_gen: v7x
topology: tpu7x:2x2x1
jax: 0.10.0
libtpu: 0.0.40
codegen_flags: <defaults>
</compile_context>

<pallas_src>
import functools

import jax
import jax.numpy as jnp
from jax.experimental import pallas as pl
from jax.experimental.pallas import tpu as pltpu

_VMEM_LIMIT_BYTES = 32 * 1024 * 1024   # scoped-VMEM request (v5e default is 16 MiB)
_SPLIT_MIN_BATCH = 256                  # below this, one grid step is cheapest


def _round_up(x, m):
    return (x + m - 1) // m * m


def _critic_kernel(s_ref, a_ref, w1s_ref, w1a_ref, b1_ref, w2_ref, b2_ref,
                   w3_ref, b3_ref, o_ref):
    cd = w1s_ref.dtype  # MXU compute dtype (bf16 by default)

    # Layer 1: concat-free -> two MXU matmuls into one f32 accumulator.
    h1 = jnp.dot(s_ref[...].astype(cd), w1s_ref[...],
                 preferred_element_type=jnp.float32)
    h1 = h1 + jnp.dot(a_ref[...].astype(cd), w1a_ref[...],
                      preferred_element_type=jnp.float32)
    h1 = jnp.maximum(h1 + b1_ref[...], 0.0)

    # Layer 2: MXU matmul, f32 accumulate; bias + ReLU on the VPU.
    h2 = jnp.dot(h1.astype(cd), w2_ref[...],
                 preferred_element_type=jnp.float32)
    h2 = jnp.maximum(h2 + b2_ref[...], 0.0)

    # Layer 3 (H -> 1): VPU multiply + XLU lane reduce; b3 is an SMEM scalar.
    q = jnp.sum(h2 * w3_ref[...], axis=-1, keepdims=True) + b3_ref[0]
    o_ref[...] = q.astype(o_ref.dtype)


def prepare_td3_critic_params(params, state_dim, compute_dtype=jnp.bfloat16):
    """One-time parameter prep, hoisted out of the per-call forward.

    Splits w1 into state/action halves, casts matmul weights to the MXU compute
    dtype, and reshapes biases / w3 into the layouts the kernel expects.
    Call once after (re)loading parameters, not every forward call.
    Pass compute_dtype=jnp.float32 for exact f32-MXU math (slower).
    """
    w1, b1, w2, b2, w3, b3 = params
    return (
        w1[:state_dim].astype(compute_dtype),            # (S, H)
        w1[state_dim:].astype(compute_dtype),             # (A, H)
        b1.reshape(1, -1).astype(jnp.float32),            # (1, H)
        w2.astype(compute_dtype),                         # (H, H)
        b2.reshape(1, -1).astype(jnp.float32),            # (1, H)
        w3.reshape(1, -1).astype(jnp.float32),            # (1, H)
        b3.reshape(-1).astype(jnp.float32),               # (1,) -> SMEM scalar
    )


@functools.partial(jax.jit, static_argnames=("block_b",))
def td3_critic_forward(state, action, prepared_params, *, block_b=4096):
    """Pallas implementation of TD3Critic.forward(state, action) -> [B, 1]."""
    w1_s, w1_a, b1, w2, b2, w3, b3 = prepared_params
    B, S = state.shape
    A = action.shape[1]
    H = w1_s.shape[1]
    D = S + A

    # ---- batch tiling: as few grid steps as VMEM allows -------------------
    # Rough per-row VMEM footprint: f32 h1 + h2 (8H bytes) + bf16 h1 copy +
    # double-buffered input tiles; ~12*H bytes/row is a safe bound.
    vmem_rows = max(8, ((_VMEM_LIMIT_BYTES // 2) // (12 * H)) // 8 * 8)
    tb_cap = max(8, min(block_b, vmem_rows))
    if B <= _SPLIT_MIN_BATCH and B <= tb_cap:
        TB = B                                             # one exact block
    else:
        # >= 2 steps so dimension_semantics=("parallel",) uses both v7x cores.
        TB = min(tb_cap, _round_up(pl.cdiv(B, 2), 8))
    G = pl.cdiv(B, TB)
    rows = G * TB   # output rows; any row >= B comes from an overhanging block

    batch_spec = lambda cols: pl.BlockSpec((TB, cols), lambda i: (i, 0))
    const_spec = lambda shape: pl.BlockSpec(shape, lambda i: (0, 0))

    flops = 2 * rows * (D * H + H * H + H)
    bytes_accessed = (rows * (D + 1) * 4                       # activations + q
                      + (S * H + A * H + H * H) * w2.dtype.itemsize  # weights
                      + (3 * H + 1) * 4)                        # b1, b2, w3, b3

    out = pl.pallas_call(
        _critic_kernel,
        out_shape=jax.ShapeDtypeStruct((rows, 1), jnp.float32),
        grid=(G,),
        in_specs=[
            batch_spec(S),                                       # state tile
            batch_spec(A),                                       # action tile
            const_spec((S, H)),                                  # w1_s (resident)
            const_spec((A, H)),                                  # w1_a (resident)
            const_spec((1, H)),                                  # b1
            const_spec((H, H)),                                  # w2   (resident)
            const_spec((1, H)),                                  # b2
            const_spec((1, H)),                                  # w3 row
            pl.BlockSpec(memory_space=pltpu.MemorySpace.SMEM),   # b3 scalar
        ],
        out_specs=pl.BlockSpec((TB, 1), lambda i: (i, 0)),
        compiler_params=pltpu.CompilerParams(
            dimension_semantics=("parallel",),
            vmem_limit_bytes=_VMEM_LIMIT_BYTES),
        cost_estimate=pl.CostEstimate(
            flops=int(flops), transcendentals=0,
            bytes_accessed=int(bytes_accessed)),
    )(state, action, w1_s, w1_a, b1, w2, b2, w3, b3)

    return out[:B]


def init_td3_critic_params(key, state_dim, action_dim, hidden_size):
    """Deterministic init mirroring nn.Linear default (U(-1/sqrt(fan_in), +))."""
    def linear(k, fan_in, fan_out):
        kw, kb = jax.random.split(k)
        bound = 1.0 / jnp.sqrt(jnp.float32(fan_in))
        w = jax.random.uniform(kw, (fan_in, fan_out), jnp.float32, -bound, bound)
        b = jax.random.uniform(kb, (fan_out,), jnp.float32, -bound, bound)
        return w, b

    k1, k2, k3 = jax.random.split(key, 3)
    d_in = state_dim + action_dim
    w1, b1 = linear(k1, d_in, hidden_size)
    w2, b2 = linear(k2, hidden_size, hidden_size)
    w3, b3 = linear(k3, hidden_size, 1)
    return (w1, b1, w2, b2, w3, b3)


def _reference(state, action, params, compute_dtype=jnp.bfloat16):
    """Plain-JAX reference mirroring the kernel's bf16-MXU / f32-accum math."""
    w1, b1, w2, b2, w3, b3 = params
    x = jnp.concatenate([state, action], axis=1).astype(compute_dtype)
    h1 = jnp.maximum(
        jnp.dot(x, w1.astype(compute_dtype),
                preferred_element_type=jnp.float32) + b1.reshape(1, -1), 0.0)
    h2 = jnp.maximum(
        jnp.dot(h1.astype(compute_dtype), w2.astype(compute_dtype),
                preferred_element_type=jnp.float32) + b2.reshape(1, -1), 0.0)
    return (jnp.sum(h2 * w3.reshape(1, -1), axis=-1, keepdims=True)
            + b3.reshape(1, 1))


if __name__ == "__main__":
    key = jax.random.PRNGKey(0)
    k_state, k_action, k_params, k_big = jax.random.split(key, 4)

    batch, state_dim, action_dim, hidden_size = 2, 17, 6, 32

    state = jax.random.normal(k_state, (batch, state_dim), jnp.float32)
    action = jax.random.normal(k_action, (batch, action_dim), jnp.float32)
    params = init_td3_critic_params(k_params, state_dim, action_dim, hidden_size)
    prepared = prepare_td3_critic_params(params, state_dim)  # one-time prep

    # Small batch: a single exact (B, .) block, grid of 1, no padding/copies.
    q = jax.block_until_ready(td3_critic_forward(state, action, prepared))
    assert q.shape == (batch, 1)
    ref = _reference(state, action, params)
    assert jnp.allclose(q, ref, atol=1e-2, rtol=1e-2)

    # Larger batch: B=320 -> TB=160, grid of 2 (one step per v7x TensorCore),
    # still no wrapper-side padding copy.
    big_b = 320
    ks, ka = jax.random.split(k_big)
    state_b = jax.random.normal(ks, (big_b, state_dim), jnp.float32)
    action_b = jax.random.normal(ka, (big_b, action_dim), jnp.float32)
    q_b = jax.block_until_ready(td3_critic_forward(state_b, action_b, prepared))
    assert q_b.shape == (big_b, 1)
    ref_b = _reference(state_b, action_b, params)
    assert jnp.allclose(q_b, ref_b, atol=1e-2, rtol=1e-2)

    print("KERNEL_OK")
</pallas_src>

<mosaic_0001>
module attributes {stable_mosaic.version = 11 : i64} {
  func.func @_critic_kernel(%arg0: i32, %arg1: memref<2x17xf32, #tpu.memory_space<vmem>>, %arg2: memref<2x6xf32, #tpu.memory_space<vmem>>, %arg3: memref<17x32xbf16, #tpu.memory_space<vmem>>, %arg4: memref<6x32xbf16, #tpu.memory_space<vmem>>, %arg5: memref<1x32xf32, #tpu.memory_space<vmem>>, %arg6: memref<32x32xbf16, #tpu.memory_space<vmem>>, %arg7: memref<1x32xf32, #tpu.memory_space<vmem>>, %arg8: memref<1x32xf32, #tpu.memory_space<vmem>>, %arg9: memref<1xf32, #tpu.memory_space<smem>>, %arg10: memref<2x1xf32, #tpu.memory_space<vmem>>) attributes {dimension_semantics = [#tpu.dimension_semantics<parallel>], iteration_bounds = array<i64: 1>, scalar_prefetch = 0 : i64, scratch_operands = 0 : i64, tpu.core_type = #tpu.core_type<tc>, window_params = [{transform_indices = @transform_0, window_bounds = array<i64: 2, 17>}, {transform_indices = @transform_1, window_bounds = array<i64: 2, 6>}, {pipeline_mode = #tpu.pipeline_mode<synchronous>, transform_indices = @transform_2, window_bounds = array<i64: 17, 32>}, {pipeline_mode = #tpu.pipeline_mode<synchronous>, transform_indices = @transform_3, window_bounds = array<i64: 6, 32>}, {pipeline_mode = #tpu.pipeline_mode<synchronous>, transform_indices = @transform_4, window_bounds = array<i64: 1, 32>}, {pipeline_mode = #tpu.pipeline_mode<synchronous>, transform_indices = @transform_5, window_bounds = array<i64: 32, 32>}, {pipeline_mode = #tpu.pipeline_mode<synchronous>, transform_indices = @transform_6, window_bounds = array<i64: 1, 32>}, {pipeline_mode = #tpu.pipeline_mode<synchronous>, transform_indices = @transform_7, window_bounds = array<i64: 1, 32>}, {transform_indices = @transform_8, window_bounds = array<i64: 1>}, {transform_indices = @transform_9, window_bounds = array<i64: 2, 1>}]} {
    %c0 = arith.constant 0 : index
    %c0_0 = arith.constant 0 : index
    %0 = vector.load %arg1[%c0, %c0_0] : memref<2x17xf32, #tpu.memory_space<vmem>>, vector<2x17xf32>
    %1 = arith.truncf %0 : vector<2x17xf32> to vector<2x17xbf16>
    %c0_1 = arith.constant 0 : index
    %c0_2 = arith.constant 0 : index
    %2 = vector.load %arg3[%c0_1, %c0_2] : memref<17x32xbf16, #tpu.memory_space<vmem>>, vector<17x32xbf16>
    %cst = arith.constant dense<0.000000e+00> : vector<2x32xf32>
    %3 = tpu.matmul %1, %2, %cst {dimension_numbers = #tpu.dot_dimension_numbers<[1], [0], [0], [1], [0, 0, 1, 1], [], []>} : vector<2x17xbf16>, vector<17x32xbf16>, vector<2x32xf32> -> vector<2x32xf32>
    %c0_3 = arith.constant 0 : index
    %c0_4 = arith.constant 0 : index
    %4 = vector.load %arg2[%c0_3, %c0_4] : memref<2x6xf32, #tpu.memory_space<vmem>>, vector<2x6xf32>
    %5 = arith.truncf %4 : vector<2x6xf32> to vector<2x6xbf16>
    %c0_5 = arith.constant 0 : index
    %c0_6 = arith.constant 0 : index
    %6 = vector.load %arg4[%c0_5, %c0_6] : memref<6x32xbf16, #tpu.memory_space<vmem>>, vector<6x32xbf16>
    %cst_7 = arith.constant dense<0.000000e+00> : vector<2x32xf32>
    %7 = tpu.matmul %5, %6, %cst_7 {dimension_numbers = #tpu.dot_dimension_numbers<[1], [0], [0], [1], [0, 0, 1, 1], [], []>} : vector<2x6xbf16>, vector<6x32xbf16>, vector<2x32xf32> -> vector<2x32xf32>
    %8 = arith.addf %3, %7 : vector<2x32xf32>
    %c0_8 = arith.constant 0 : index
    %c0_9 = arith.constant 0 : index
    %9 = vector.load %arg5[%c0_8, %c0_9] : memref<1x32xf32, #tpu.memory_space<vmem>>, vector<1x32xf32>
    %10 = vector.broadcast %9 : vector<1x32xf32> to vector<2x32xf32>
    %11 = arith.addf %8, %10 : vector<2x32xf32>
    %cst_10 = arith.constant 0.000000e+00 : f32
    %12 = vector.broadcast %cst_10 : f32 to vector<2x32xf32>
    %13 = arith.maximumf %11, %12 : vector<2x32xf32>
    %14 = arith.truncf %13 : vector<2x32xf32> to vector<2x32xbf16>
    %c0_11 = arith.constant 0 : index
    %c0_12 = arith.constant 0 : index
    %15 = vector.load %arg6[%c0_11, %c0_12] : memref<32x32xbf16, #tpu.memory_space<vmem>>, vector<32x32xbf16>
    %cst_13 = arith.constant dense<0.000000e+00> : vector<2x32xf32>
    %16 = tpu.matmul %14, %15, %cst_13 {dimension_numbers = #tpu.dot_dimension_numbers<[1], [0], [0], [1], [0, 0, 1, 1], [], []>} : vector<2x32xbf16>, vector<32x32xbf16>, vector<2x32xf32> -> vector<2x32xf32>
    %c0_14 = arith.constant 0 : index
    %c0_15 = arith.constant 0 : index
    %17 = vector.load %arg7[%c0_14, %c0_15] : memref<1x32xf32, #tpu.memory_space<vmem>>, vector<1x32xf32>
    %18 = vector.broadcast %17 : vector<1x32xf32> to vector<2x32xf32>
    %19 = arith.addf %16, %18 : vector<2x32xf32>
    %cst_16 = arith.constant 0.000000e+00 : f32
    %20 = vector.broadcast %cst_16 : f32 to vector<2x32xf32>
    %21 = arith.maximumf %19, %20 : vector<2x32xf32>
    %c0_17 = arith.constant 0 : index
    %c0_18 = arith.constant 0 : index
    %22 = vector.load %arg8[%c0_17, %c0_18] : memref<1x32xf32, #tpu.memory_space<vmem>>, vector<1x32xf32>
    %23 = vector.broadcast %22 : vector<1x32xf32> to vector<2x32xf32>
    %24 = arith.mulf %21, %23 : vector<2x32xf32>
    %cst_19 = arith.constant dense<0.000000e+00> : vector<2xf32>
    %25 = vector.multi_reduction <add>, %24, %cst_19 [1] : vector<2x32xf32> to vector<2xf32>
    %26 = vector.shape_cast %25 : vector<2xf32> to vector<2x1xf32>
    %c0_20 = arith.constant 0 : index
    %27 = memref.load %arg9[%c0_20] : memref<1xf32, #tpu.memory_space<smem>>
    %28 = vector.broadcast %27 : f32 to vector<2x1xf32>
    %29 = arith.addf %26, %28 : vector<2x1xf32>
    %c0_21 = arith.constant 0 : index
    %c0_22 = arith.constant 0 : index
    %30 = vector.load %arg10[%c0_21, %c0_22] : memref<2x1xf32, #tpu.memory_space<vmem>>, vector<2x1xf32>
    tpu.vector_store %arg10[%c0_21, %c0_22], %29 {strides = array<i32>} : memref<2x1xf32, #tpu.memory_space<vmem>>, vector<2x1xf32>,
    return
  }
  func.func @transform_0(%arg0: i32) -> (i32, i32) {
    %c0_i32 = arith.constant 0 : i32
    %c0_i32_0 = arith.constant 0 : i32
    return %arg0, %c0_i32 : i32, i32
  }
  func.func @transform_1(%arg0: i32) -> (i32, i32) {
    %c0_i32 = arith.constant 0 : i32
    %c0_i32_0 = arith.constant 0 : i32
    return %arg0, %c0_i32 : i32, i32
  }
  func.func @transform_2(%arg0: i32) -> (i32, i32) {
    %c0_i32 = arith.constant 0 : i32
    %c0_i32_0 = arith.constant 0 : i32
    %c0_i32_1 = arith.constant 0 : i32
    return %c0_i32, %c0_i32_0 : i32, i32
  }
  func.func @transform_3(%arg0: i32) -> (i32, i32) {
    %c0_i32 = arith.constant 0 : i32
    %c0_i32_0 = arith.constant 0 : i32
    %c0_i32_1 = arith.constant 0 : i32
    return %c0_i32, %c0_i32_0 : i32, i32
  }
  func.func @transform_4(%arg0: i32) -> (i32, i32) {
    %c0_i32 = arith.constant 0 : i32
    %c0_i32_0 = arith.constant 0 : i32
    %c0_i32_1 = arith.constant 0 : i32
    return %c0_i32, %c0_i32_0 : i32, i32
  }
  func.func @transform_5(%arg0: i32) -> (i32, i32) {
    %c0_i32 = arith.constant 0 : i32
    %c0_i32_0 = arith.constant 0 : i32
    %c0_i32_1 = arith.constant 0 : i32
    return %c0_i32, %c0_i32_0 : i32, i32
  }
  func.func @transform_6(%arg0: i32) -> (i32, i32) {
    %c0_i32 = arith.constant 0 : i32
    %c0_i32_0 = arith.constant 0 : i32
    %c0_i32_1 = arith.constant 0 : i32
    return %c0_i32, %c0_i32_0 : i32, i32
  }
  func.func @transform_7(%arg0: i32) -> (i32, i32) {
    %c0_i32 = arith.constant 0 : i32
    %c0_i32_0 = arith.constant 0 : i32
    %c0_i32_1 = arith.constant 0 : i32
    return %c0_i32, %c0_i32_0 : i32, i32
  }
  func.func @transform_8(%arg0: i32) -> i32 {
    %c0_i32 = arith.constant 0 : i32
    %c0_i32_0 = arith.constant 0 : i32
    return %c0_i32 : i32
  }
  func.func @transform_9(%arg0: i32) -> (i32, i32) {
    %c0_i32 = arith.constant 0 : i32
    %c0_i32_0 = arith.constant 0 : i32
    return %arg0, %c0_i32 : i32, i32
  }
}

</mosaic_0001>

<llo_original>
// kernel: td3_critic_forward.1
$region0: #{td3_critic_forward.1}
  #allocation0 [shape = 'u32[]', space=smem, size = 0x4, offset = 0x4, fixed_abs, tag = 'smem constant byte address 0x4 - core index']
  #allocation1 [shape = 'u32[144,128]{1,0:T(1,128)}', space=vmem, size = 0x12000, scoped, tag = 'internal scratch']
  #allocation2 [shape = 'f32[1]{0:T(128)S(6)}', space=smem, size = 0x200, scoped, tag = 'scoped memory for td3_critic_forward.1']
  %s0 = inlined_call_operand.vmem [shape: f32[2,17], index: 0, kind: input, shape index: {}]
  %s1 = inlined_call_operand.hbm [shape: f32[2,6], index: 1, kind: input, shape index: {}]
  %s2 = inlined_call_operand.hbm [shape: bf16[17,32], index: 2, kind: input, shape index: {}]
  %s3 = inlined_call_operand.vmem [shape: bf16[6,32], index: 3, kind: input, shape index: {}]
  %s4 = inlined_call_operand.hbm [shape: f32[1,32], index: 4, kind: input, shape index: {}]
  %s5 = inlined_call_operand.vmem [shape: bf16[32,32], index: 5, kind: input, shape index: {}]
  %s6 = inlined_call_operand.vmem [shape: f32[1,32], index: 6, kind: input, shape index: {}]
  %s7 = inlined_call_operand.vmem [shape: f32[1,32], index: 7, kind: input, shape index: {}]
  %s8 = inlined_call_operand.<no memory space> [shape: f32[1], index: 8, kind: input, shape index: {}]
  %s9 = inlined_call_operand.vmem [shape: f32[2,1], index: 9, kind: output, shape index: {}]
  %s10 = sld [smem:[#allocation0]]
  $region58: #{td3_critic_forward.1} parent=0
    _
  %s12 = ssub.s32 1, %s10
  %s13 = scalar_select 0, %s12, %s10
  %14 = sst [smem:[#allocation2]] %s8
  $region1: #{td3_critic_forward.1} parent=0
    #allocation3 [shape = 'u8[1024]{0}', space=vmem, size = 0x400, scoped, tag = 'input window, operand 1, single buffered']
    #allocation4 [shape = 's32[1]{0}', space=sflag, size = 0x4, scoped, tag = 'scoped memory for td3_critic_forward.1']
    #allocation5 [shape = 'u8[6144]{0}', space=vmem, size = 0x1800, scoped, tag = 'input window, operand 2, single buffered']
    #allocation6 [shape = 's32[1]{0}', space=sflag, size = 0x4, scoped, tag = 'scoped memory for td3_critic_forward.1']
    #allocation7 [shape = 'u8[512]{0}', space=vmem, size = 0x400, scoped, tag = 'input window, operand 4, single buffered']
    %15 = vsyncpa [#allocation4], 0
    %16 = vsyncpa [#allocation6], 0
    // Predicated region
    $region2: #{td3_critic_forward.1} parent=1 // pred_check
      _
    $region3: #{td3_critic_forward.1} parent=1 // pred_check_branch
      %18 = sbr.rel (0) target = $region5
    $region4: #{td3_critic_forward.1} parent=1 // pred_region
      _
    $region5: #{td3_critic_forward.1} parent=1 // pred_fallthru
      _
    // Predicated region
    $region6: #{td3_critic_forward.1} parent=1 // pred_check
      _
    $region7: #{td3_critic_forward.1} parent=1 // pred_check_branch
      %20 = sbr.rel (0) target = $region9
    $region8: #{td3_critic_forward.1} parent=1 // pred_region
      %s22 = ssub.s32 32, 32
      %23 = vsyncadd [#allocation4], %s22
      %s25 = sshll.u32 [#allocation3], 4
      %s26 = int_to_ptr.vmem [resolvable:$true] %s25
      %28 = dma.hbm_to_vmem [thread:$0]  %s1, 32, %s26, [#allocation4]
    $region9: #{td3_critic_forward.1} parent=1 // pred_fallthru
      _
    // Predicated region
    $region10: #{td3_critic_forward.1} parent=1 // pred_check
      _
    $region11: #{td3_critic_forward.1} parent=1 // pred_check_branch
      %30 = sbr.rel (0) target = $region13
    $region12: #{td3_critic_forward.1} parent=1 // pred_region
      %s32 = ssub.s32 192, 192
      %33 = vsyncadd [#allocation6], %s32
      %s34 = sshll.u32 [#allocation5], 4
      %s35 = int_to_ptr.vmem [resolvable:$true] %s34
      %40 = dma.hbm_to_vmem [thread:$0]  %s2, 192, %s35, [#allocation6], 64, 64, 4
    $region13: #{td3_critic_forward.1} parent=1 // pred_fallthru
      _
    // Predicated region
    $region14: #{td3_critic_forward.1} parent=1 // pred_check
      _
    $region15: #{td3_critic_forward.1} parent=1 // pred_check_branch
      %42 = sbr.rel (0) target = $region17
    $region16: #{td3_critic_forward.1} parent=1 // pred_region
      _
    $region17: #{td3_critic_forward.1} parent=1 // pred_fallthru
      _
    // Predicated region
    $region18: #{td3_critic_forward.1} parent=1 // pred_check
      _
    $region19: #{td3_critic_forward.1} parent=1 // pred_check_branch
      %44 = sbr.rel (0) target = $region21
    $region20: #{td3_critic_forward.1} parent=1 // pred_region
      %s46 = ssub.s32 16, 16
      %47 = vsyncadd [#allocation6], %s46
      %s49 = sshll.u32 [#allocation7], 4
      %s50 = int_to_ptr.vmem [resolvable:$true] %s49
      %52 = dma.hbm_to_vmem [thread:$0]  %s4, 16, %s50, [#allocation6]
    $region21: #{td3_critic_forward.1} parent=1 // pred_fallthru
      _
    // Predicated region
    $region22: #{td3_critic_forward.1} parent=1 // pred_check
      _
    $region23: #{td3_critic_forward.1} parent=1 // pred_check_branch
      %54 = sbr.rel (0) target = $region25
    $region24: #{td3_critic_forward.1} parent=1 // pred_region
      _
    $region25: #{td3_critic_forward.1} parent=1 // pred_fallthru
      _
    // Predicated region
    $region26: #{td3_critic_forward.1} parent=1 // pred_check
      _
    $region27: #{td3_critic_forward.1} parent=1 // pred_check_branch
      %56 = sbr.rel (0) target = $region29
    $region28: #{td3_critic_forward.1} parent=1 // pred_region
      _
    $region29: #{td3_critic_forward.1} parent=1 // pred_fallthru
      _
    // Predicated region
    $region30: #{td3_critic_forward.1} parent=1 // pred_check
      _
    $region31: #{td3_critic_forward.1} parent=1 // pred_check_branch
      %58 = sbr.rel (0) target = $region33
    $region32: #{td3_critic_forward.1} parent=1 // pred_region
      _
    $region33: #{td3_critic_forward.1} parent=1 // pred_fallthru
      _
    // Predicated region
    $region34: #{td3_critic_forward.1} parent=1 // pred_check
      _
    $region35: #{td3_critic_forward.1} parent=1 // pred_check_branch
      %60 = sbr.rel (0) target = $region37
    $region36: #{td3_critic_forward.1} parent=1 // pred_region
      _
    $region37: #{td3_critic_forward.1} parent=1 // pred_fallthru
      _
    // Predicated region
    $region38: #{td3_critic_forward.1} parent=1 // pred_check
      _
    $region39: #{td3_critic_forward.1} parent=1 // pred_check_branch
      %62 = sbr.rel (0) target = $region41
    $region40: #{td3_critic_forward.1} parent=1 // pred_region
      %63 = dma.done [#allocation4], 32
    $region41: #{td3_critic_forward.1} parent=1 // pred_fallthru
      _
    // Predicated region
    $region42: #{td3_critic_forward.1} parent=1 // pred_check
      _
    $region43: #{td3_critic_forward.1} parent=1 // pred_check_branch
      %65 = sbr.rel (0) target = $region45
    $region44: #{td3_critic_forward.1} parent=1 // pred_region
      %66 = dma.done [#allocation6], 192
    $region45: #{td3_critic_forward.1} parent=1 // pred_fallthru
      _
    // Predicated region
    $region46: #{td3_critic_forward.1} parent=1 // pred_check
      _
    $region47: #{td3_critic_forward.1} parent=1 // pred_check_branch
      %68 = sbr.rel (0) target = $region49
    $region48: #{td3_critic_forward.1} parent=1 // pred_region
      %69 = dma.done [#allocation6], 16
    $region49: #{td3_critic_forward.1} parent=1 // pred_fallthru
      _
    %v71 = vld [vmem:[%s0] sm:$0x3]
    %v72 = vpack.c.bf16 %v71, %v71
    %v73 = vld [vmem:[#allocation5] sm:$0xf]
    %v74 = vld [vmem:[#allocation5 + $0x4] sm:$0xf]
    %v75 = vld [vmem:[#allocation5 + $0x8] sm:$0x1]
    %v76 = vld [vmem:[#allocation3] sm:$0x3]
    %v77 = vpack.c.bf16 %v76, %v76
    %v78 = vld [vmem:[%s3] sm:$0x7]
    %vm79 = vcmask 48128
    %v81 = vsel %vm79, %v77, 0
    %vm83 = vcmask 1042432
    %v85 = vsel %vm83, %v78, 0
    %87 = vmatprep.subr.bf16.mxu0 0
    %88 = vmatpush1.bf16.msra.mxu0 %v85
    %89 = vmatprep.subr.bf16.mxu0 0
    %90 = vmatpush1.bf16.msra.mxu0 0
    %91 = vmatprep.subr.bf16.mxu0 0
    %92 = vmatpush1.bf16.msra.mxu0 0
    %93 = vmatprep.subr.bf16.mxu0 0
    %94 = vmatpush1.bf16.msra.mxu0 0
    %95 = vmatprep.subr.bf16.mxu0 0
    %96 = vmatpush1.bf16.msra.mxu0 0
    %97 = vmatprep.subr.bf16.mxu0 0
    %98 = vmatpush1.bf16.msra.mxu0 0
    %99 = vmatprep.subr.bf16.mxu0 0
    %100 = vmatpush1.bf16.msra.mxu0 0
    %101 = vmatprep.subr.bf16.mxu0 0
    %102 = vmatpush1.bf16.msra.mxu0 0
    %103 = vmatprep.subr.bf16.mxu0 0
    %104 = vmatpush1.bf16.msra.mxu0 0
    %105 = vmatprep.subr.bf16.mxu0 0
    %106 = vmatpush1.bf16.msra.mxu0 0
    %107 = vmatprep.subr.bf16.mxu0 0
    %108 = vmatpush1.bf16.msra.mxu0 0
    %109 = vmatprep.subr.bf16.mxu0 0
    %110 = vmatpush1.bf16.msra.mxu0 0
    %111 = vmatprep.subr.bf16.mxu0 0
    %112 = vmatpush1.bf16.msra.mxu0 0
    %113 = vmatprep.subr.bf16.mxu0 0
    %114 = vmatpush1.bf16.msra.mxu0 0
    %115 = vmatprep.subr.bf16.mxu0 0
    %116 = vmatpush1.bf16.msra.mxu0 0
    %117 = vmatprep.subr.bf16.mxu0 0
    %118 = vmatpush1.bf16.msra.mxu0 0
    %119 = vmatprep.mubr.bf16.mxu0 0
    %120 = vmatmul.mubr.bf16.gmra.mrb[0].mxu0 %v81
    %v121 = vpop.f32.mrb[0].mxu0
    %v122 = vadd.f32 0.0, %v121
    %v123 = vpop.f32.mrb[0].mxu0
    %v124 = vpop.f32.mrb[0].mxu0
    %v125 = vpop.f32.mrb[0].mxu0
    %126 = vdwg.mxu0
    %v130 = vunpack.c.l.b16 %v73
    %v131 = vunpack.c.l.b16 %v74
    %v132 = vunpack.c.l.b16 %v75
    %v133 = vpack.c.b16 %v131, %v130
    %v134 = vpack.c.b16 %v132, %v132
    %vm136 = vcmask 138240
    %v138 = vsel %vm136, %v72, 0
    %vm140 = vcmask 1040384
    %v141 = vsel 0, 4294967295, 65535
    %v142 = vsel %vm140, %v141, 0
    %v144 = vand.u32 %v134, %v142
    %146 = vmatprep.subr.bf16.mxu0 0
    %147 = vmatpush1.bf16.msra.mxu0 %v133
    %148 = vmatprep.subr.bf16.mxu0 0
    %149 = vmatpush1.bf16.msra.mxu0 %v144
    %150 = vmatprep.subr.bf16.mxu0 0
    %151 = vmatpush1.bf16.msra.mxu0 0
    %152 = vmatprep.subr.bf16.mxu0 0
    %153 = vmatpush1.bf16.msra.mxu0 0
    %154 = vmatprep.subr.bf16.mxu0 0
    %155 = vmatpush1.bf16.msra.mxu0 0
    %156 = vmatprep.subr.bf16.mxu0 0
    %157 = vmatpush1.bf16.msra.mxu0 0
    %158 = vmatprep.subr.bf16.mxu0 0
    %159 = vmatpush1.bf16.msra.mxu0 0
    %160 = vmatprep.subr.bf16.mxu0 0
    %161 = vmatpush1.bf16.msra.mxu0 0
    %162 = vmatprep.subr.bf16.mxu0 0
    %163 = vmatpush1.bf16.msra.mxu0 0
    %164 = vmatprep.subr.bf16.mxu0 0
    %165 = vmatpush1.bf16.msra.mxu0 0
    %166 = vmatprep.subr.bf16.mxu0 0
    %167 = vmatpush1.bf16.msra.mxu0 0
    %168 = vmatprep.subr.bf16.mxu0 0
    %169 = vmatpush1.bf16.msra.mxu0 0
    %170 = vmatprep.subr.bf16.mxu0 0
    %171 = vmatpush1.bf16.msra.mxu0 0
    %172 = vmatprep.subr.bf16.mxu0 0
    %173 = vmatpush1.bf16.msra.mxu0 0
    %174 = vmatprep.subr.bf16.mxu0 0
    %175 = vmatpush1.bf16.msra.mxu0 0
    %176 = vmatprep.subr.bf16.mxu0 0
    %177 = vmatpush1.bf16.msra.mxu0 0
    %178 = vmatprep.mubr.bf16.mxu0 0
    %179 = vmatmul.mubr.bf16.gmra.mrb[0].mxu0 %v138
    %v180 = vpop.f32.mrb[0].mxu0
    %v181 = vadd.f32 %v122, %v180
    %v182 = vpop.f32.mrb[0].mxu0
    %v183 = vpop.f32.mrb[0].mxu0
    %v184 = vpop.f32.mrb[0].mxu0
    %185 = vdwg.mxu0
    %v186 = vld [vmem:[#allocation7] sm:$0x1]
    %v188 = vlaneseq
    %v189 = vshrl.u32 %v188, 7
    %v190 = vsub.s32 0, %v189
    %v191 = vrot.slane %v186, %v190
    %v193 = vadd.f32 %v181, %v191
    %v194 = vmax.f32 %v193, 0.0
    %v195 = vpack.c.bf16 %v194, %v194
    %v196 = vld [vmem:[%s5] sm:$0xf]
    %v197 = vld [vmem:[%s5 + $0x4] sm:$0xf]
    %v198 = vld [vmem:[%s5 + $0x8] sm:$0xf]
    %v199 = vld [vmem:[%s5 + $0xc] sm:$0xf]
    %v200 = vld [vmem:[%s6] sm:$0x1]
    %v202 = vlaneseq
    %v203 = vshrl.u32 %v202, 7
    %v204 = vsub.s32 0, %v203
    %v205 = vrot.slane %v200, %v204
    %v211 = vunpack.c.l.b16 %v196
    %v212 = vunpack.c.l.b16 %v197
    %v213 = vunpack.c.l.b16 %v198
    %v214 = vunpack.c.l.b16 %v199
    %v215 = vpack.c.b16 %v212, %v211
    %v216 = vpack.c.b16 %v214, %v213
    %vm219 = vcmask 261120
    %v221 = vsel %vm219, %v195, 0
    %223 = vmatprep.subr.bf16.mxu0 0
    %224 = vmatpush1.bf16.msra.mxu0 %v215
    %225 = vmatprep.subr.bf16.mxu0 0
    %226 = vmatpush1.bf16.msra.mxu0 %v216
    %227 = vmatprep.subr.bf16.mxu0 0
    %228 = vmatpush1.bf16.msra.mxu0 0
    %229 = vmatprep.subr.bf16.mxu0 0
    %230 = vmatpush1.bf16.msra.mxu0 0
    %231 = vmatprep.subr.bf16.mxu0 0
    %232 = vmatpush1.bf16.msra.mxu0 0
    %233 = vmatprep.subr.bf16.mxu0 0
    %234 = vmatpush1.bf16.msra.mxu0 0
    %235 = vmatprep.subr.bf16.mxu0 0
    %236 = vmatpush1.bf16.msra.mxu0 0
    %237 = vmatprep.subr.bf16.mxu0 0
    %238 = vmatpush1.bf16.msra.mxu0 0
    %239 = vmatprep.subr.bf16.mxu0 0
    %240 = vmatpush1.bf16.msra.mxu0 0
    %241 = vmatprep.subr.bf16.mxu0 0
    %242 = vmatpush1.bf16.msra.mxu0 0
    %243 = vmatprep.subr.bf16.mxu0 0
    %244 = vmatpush1.bf16.msra.mxu0 0
    %245 = vmatprep.subr.bf16.mxu0 0
    %246 = vmatpush1.bf16.msra.mxu0 0
    %247 = vmatprep.subr.bf16.mxu0 0
    %248 = vmatpush1.bf16.msra.mxu0 0
    %249 = vmatprep.subr.bf16.mxu0 0
    %250 = vmatpush1.bf16.msra.mxu0 0
    %251 = vmatprep.subr.bf16.mxu0 0
    %252 = vmatpush1.bf16.msra.mxu0 0
    %253 = vmatprep.subr.bf16.mxu0 0
    %254 = vmatpush1.bf16.msra.mxu0 0
    %255 = vmatprep.mubr.bf16.mxu0 0
    %256 = vmatmul.mubr.bf16.gmra.mrb[0].mxu0 %v221
    %v257 = vpop.f32.mrb[0].mxu0
    %v258 = vadd.f32 %v205, %v257
    %v259 = vpop.f32.mrb[0].mxu0
    %v260 = vpop.f32.mrb[0].mxu0
    %v261 = vpop.f32.mrb[0].mxu0
    %262 = vdwg.mxu0
    %v263 = vmax.f32 %v258, 0.0
    %v264 = vld [vmem:[%s7] sm:$0x1]
    %v266 = vlaneseq
    %v267 = vshrl.u32 %v266, 7
    %v268 = vsub.s32 0, %v267
    %v269 = vrot.slane %v264, %v268
    %v271 = vmul.f32 %v263, %v269
    %vm272 = vcmask 254976
    %v273 = vsel %vm272, %v271, 0.0
    %274 = vadd.xlane.f32.xlu0 %v273
    %v275 = vpop.xlane.xlu0 %274
    %s276 = sld [smem:[#allocation2]]
    %v277 = vstv %s276
    %v278 = vadd.f32 %v275, %v277
    %vm279 = vcmask 1024
    %280 = vst.msk [vmem:[%s9] sm:$0x3] %vm279, %v278
    // Predicated region
    $region50: #{td3_critic_forward.1} parent=1 // pred_check
      _
    $region51: #{td3_critic_forward.1} parent=1 // pred_check_branch
      %282 = sbr.rel (0) target = $region53
    $region52: #{td3_critic_forward.1} parent=1 // pred_region
      _
    $region53: #{td3_critic_forward.1} parent=1 // pred_fallthru
      _
    // Predicated region
    $region54: #{td3_critic_forward.1} parent=1 // pred_check
      _
    $region55: #{td3_critic_forward.1} parent=1 // pred_check_branch
      %284 = sbr.rel (0) target = $region57
    $region56: #{td3_critic_forward.1} parent=1 // pred_region
      _
    $region57: #{td3_critic_forward.1} parent=1 // pred_fallthru
      _
    %285 = vsyncpa [#allocation4], 1
    %286 = vsyncpa [#allocation6], 1

</llo_original>
